<compile_context>
chip_gen: v7x
topology: tpu7x:2x2x1
jax: 0.10.0
libtpu: 0.0.40
codegen_flags: <defaults>
</compile_context>

<pallas_src>
import functools

import jax
import jax.numpy as jnp
import numpy as np
from jax.experimental import pallas as pl
from jax.experimental.pallas import tpu as pltpu

NUM_BITS = 8
MOMENTUM = 0.1
_QMAX = 2.0 ** NUM_BITS - 1.0
_VMEM_LIMIT_BYTES = 32 * 1024 * 1024


def _largest_divisor_tile(n, unit, cap):
    """Largest multiple of `unit` that divides `n` and is <= `cap`.

    Falls back to the full extent `n` (always a legal block dim) when `n` is
    not a multiple of `unit`, so no padding ever pollutes the min/max stats.
    """
    if n % unit != 0:
        return n
    t = max((min(n, cap) // unit) * unit, unit)
    while t >= unit:
        if n % t == 0:
            return t
        t -= unit
    return n


def _stats_kernel(x_ref, min_ref, max_ref):
    # Grid = (batch_tiles, feature_tiles); the feature axis (last grid axis)
    # is the reduction axis, so the (tb, 1) output blocks stay VMEM-resident
    # across it and act as accumulators.
    j = pl.program_id(1)

    @pl.when(j == 0)
    def _init():
        min_ref[...] = jnp.full(min_ref.shape, jnp.inf, min_ref.dtype)
        max_ref[...] = jnp.full(max_ref.shape, -jnp.inf, max_ref.dtype)

    x = x_ref[...].astype(jnp.float32)
    min_ref[...] = jnp.minimum(min_ref[...], jnp.min(x, axis=-1, keepdims=True))
    max_ref[...] = jnp.maximum(max_ref[...], jnp.max(x, axis=-1, keepdims=True))


def _apply_kernel(stats_ref, x_ref, o_ref):
    # stats_ref (SMEM, f32[3]): [min_value, scale, 1/scale]
    min_v = stats_ref[0]
    scale = stats_ref[1]
    inv_scale = stats_ref[2]

    x = x_ref[...].astype(jnp.float32)
    y = (x - min_v) * inv_scale                 # scalar reciprocal -> VPU mul
    y = jnp.round(jnp.clip(y, 0.0, _QMAX))      # clamp-then-round, like torch
    o_ref[...] = (y * scale + min_v).astype(o_ref.dtype)


@functools.partial(jax.jit, static_argnames=("momentum",))
def quant_measure_forward(x, running_min, running_max, momentum=MOMENTUM):
    """QuantMeasure.forward (training mode).

    Input layout is NCHW (B, C, H, W), exactly as in PyTorch; the kernels
    operate on the per-sample flattened view (B, C*H*W) with the flattened
    feature axis mapped to the TPU lane (last) dimension.

    Returns (output, new_running_min, new_running_max).
    """
    B = x.shape[0]
    D = 1
    for s in x.shape[1:]:
        D *= s
    x2d = x.reshape(B, D)

    tb = _largest_divisor_tile(B, 8, 256)      # sublane tile
    td = _largest_divisor_tile(D, 128, 2048)   # lane-dense tile
    nb = B // tb
    nd = D // td

    # ---- Phase 1: per-row min/max (streaming reduction over feature tiles) --
    row_min, row_max = pl.pallas_call(
        _stats_kernel,
        out_shape=(
            jax.ShapeDtypeStruct((B, 1), jnp.float32),
            jax.ShapeDtypeStruct((B, 1), jnp.float32),
        ),
        grid_spec=pl.GridSpec(
            grid=(nb, nd),
            in_specs=[pl.BlockSpec((tb, td), lambda i, j: (i, j))],
            out_specs=(
                pl.BlockSpec((tb, 1), lambda i, j: (i, 0)),
                pl.BlockSpec((tb, 1), lambda i, j: (i, 0)),
            ),
        ),
        compiler_params=pltpu.CompilerParams(
            dimension_semantics=("parallel", "arbitrary"),
            vmem_limit_bytes=_VMEM_LIMIT_BYTES,
        ),
    )(x2d)

    # ---- Tiny scalar glue (no full-array HBM traffic) ----------------------
    min_v = jnp.mean(row_min)
    max_v = jnp.mean(row_max)
    new_running_min = running_min * momentum + min_v * (1.0 - momentum)
    new_running_max = running_max * momentum + max_v * (1.0 - momentum)

    scale = jnp.maximum((max_v - min_v) / _QMAX, 1e-8)
    # Exact (not approx) scalar reciprocal: keeps the per-element math a
    # multiply while staying as close as possible to the divide reference.
    stats = jnp.stack([min_v, scale, 1.0 / scale]).astype(jnp.float32)

    # ---- Phase 2: fake-quantize (fully parallel tiled apply) ---------------
    out2d = pl.pallas_call(
        _apply_kernel,
        out_shape=jax.ShapeDtypeStruct((B, D), x2d.dtype),
        grid_spec=pl.GridSpec(
            grid=(nb, nd),
            in_specs=[
                pl.BlockSpec(memory_space=pltpu.MemorySpace.SMEM),
                pl.BlockSpec((tb, td), lambda i, j: (i, j)),
            ],
            out_specs=pl.BlockSpec((tb, td), lambda i, j: (i, j)),
        ),
        compiler_params=pltpu.CompilerParams(
            dimension_semantics=("parallel", "parallel"),
            vmem_limit_bytes=_VMEM_LIMIT_BYTES,
        ),
    )(stats, x2d)

    return out2d.reshape(x.shape), new_running_min, new_running_max


def _reference(x, running_min, running_max, momentum=MOMENTUM):
    """Plain-JAX reference of the same (deterministic) semantics."""
    B = x.shape[0]
    x2d = x.reshape(B, -1).astype(jnp.float32)
    min_v = jnp.mean(jnp.min(x2d, axis=-1))
    max_v = jnp.mean(jnp.max(x2d, axis=-1))
    scale = jnp.maximum((max_v - min_v) / _QMAX, 1e-8)
    y = jnp.round(jnp.clip((x2d - min_v) / scale, 0.0, _QMAX))
    out = (y * scale + min_v).reshape(x.shape).astype(x.dtype)
    new_rmin = running_min * momentum + min_v * (1.0 - momentum)
    new_rmax = running_max * momentum + max_v * (1.0 - momentum)
    return out, new_rmin, new_rmax, scale


if __name__ == "__main__":
    key = jax.random.PRNGKey(0)

    # Buffers from QuantMeasure.__init__: zeros(1).
    running_min = jnp.zeros((1,), jnp.float32)
    running_max = jnp.zeros((1,), jnp.float32)

    # Case 1: small NCHW conv-style activation (B, C, H, W) = (2, 4, 16, 16).
    # Case 2: slightly larger shape that exercises a multi-tile grid (nd > 1).
    shapes = [(2, 4, 16, 16), (8, 16, 16, 16)]
    for idx, shape in enumerate(shapes):
        x = jax.random.normal(jax.random.fold_in(key, idx), shape, dtype=jnp.float32)

        out, new_rmin, new_rmax = quant_measure_forward(x, running_min, running_max)
        jax.block_until_ready((out, new_rmin, new_rmax))

        ref_out, ref_rmin, ref_rmax, ref_scale = _reference(x, running_min, running_max)
        step = float(ref_scale)
        max_err = float(np.max(np.abs(np.asarray(out) - np.asarray(ref_out))))
        assert max_err <= 0.51 * step + 1e-6, (shape, max_err, step)
        assert np.allclose(np.asarray(new_rmin), np.asarray(ref_rmin), rtol=1e-5, atol=1e-6)
        assert np.allclose(np.asarray(new_rmax), np.asarray(ref_rmax), rtol=1e-5, atol=1e-6)
        assert out.shape == x.shape and out.dtype == x.dtype

    print("KERNEL_OK")
</pallas_src>

<mosaic_0001>
module attributes {stable_mosaic.version = 11 : i64} {
  func.func @_stats_kernel(%arg0: i32, %arg1: i32, %arg2: memref<2x1024xf32, #tpu.memory_space<vmem>>, %arg3: memref<2x1xf32, #tpu.memory_space<vmem>>, %arg4: memref<2x1xf32, #tpu.memory_space<vmem>>) attributes {dimension_semantics = [#tpu.dimension_semantics<parallel>, #tpu.dimension_semantics<arbitrary>], iteration_bounds = array<i64: 1, 1>, scalar_prefetch = 0 : i64, scratch_operands = 0 : i64, tpu.core_type = #tpu.core_type<tc>, window_params = [{transform_indices = @transform_0, window_bounds = array<i64: 2, 1024>}, {transform_indices = @transform_1, window_bounds = array<i64: 2, 1>}, {transform_indices = @transform_2, window_bounds = array<i64: 2, 1>}]} {
    %c0_i32 = arith.constant 0 : i32
    %0 = arith.cmpi eq, %arg1, %c0_i32 : i32
    %1 = arith.extui %0 : i1 to i32
    %c0_i32_0 = arith.constant 0 : i32
    %2 = arith.cmpi ne, %1, %c0_i32_0 : i32
    scf.if %2 {
      %cst_11 = arith.constant 0x7F800000 : f32
      %14 = vector.broadcast %cst_11 : f32 to vector<2x1xf32>
      %c0_12 = arith.constant 0 : index
      %c0_13 = arith.constant 0 : index
      %15 = vector.load %arg3[%c0_12, %c0_13] : memref<2x1xf32, #tpu.memory_space<vmem>>, vector<2x1xf32>
      tpu.vector_store %arg3[%c0_12, %c0_13], %14 {strides = array<i32>} : memref<2x1xf32, #tpu.memory_space<vmem>>, vector<2x1xf32>,
      %cst_14 = arith.constant 0xFF800000 : f32
      %16 = vector.broadcast %cst_14 : f32 to vector<2x1xf32>
      %c0_15 = arith.constant 0 : index
      %c0_16 = arith.constant 0 : index
      %17 = vector.load %arg4[%c0_15, %c0_16] : memref<2x1xf32, #tpu.memory_space<vmem>>, vector<2x1xf32>
      tpu.vector_store %arg4[%c0_15, %c0_16], %16 {strides = array<i32>} : memref<2x1xf32, #tpu.memory_space<vmem>>, vector<2x1xf32>,
    } else {
    }
    %c0 = arith.constant 0 : index
    %c0_1 = arith.constant 0 : index
    %3 = vector.load %arg2[%c0, %c0_1] : memref<2x1024xf32, #tpu.memory_space<vmem>>, vector<2x1024xf32>
    %c0_2 = arith.constant 0 : index
    %c0_3 = arith.constant 0 : index
    %4 = vector.load %arg3[%c0_2, %c0_3] : memref<2x1xf32, #tpu.memory_space<vmem>>, vector<2x1xf32>
    %cst = arith.constant dense<0x7F800000> : vector<2xf32>
    %5 = vector.multi_reduction <minimumf>, %3, %cst [1] : vector<2x1024xf32> to vector<2xf32>
    %6 = vector.shape_cast %5 : vector<2xf32> to vector<2x1xf32>
    %7 = arith.minimumf %4, %6 : vector<2x1xf32>
    %c0_4 = arith.constant 0 : index
    %c0_5 = arith.constant 0 : index
    %8 = vector.load %arg3[%c0_4, %c0_5] : memref<2x1xf32, #tpu.memory_space<vmem>>, vector<2x1xf32>
    tpu.vector_store %arg3[%c0_4, %c0_5], %7 {strides = array<i32>} : memref<2x1xf32, #tpu.memory_space<vmem>>, vector<2x1xf32>,
    %c0_6 = arith.constant 0 : index
    %c0_7 = arith.constant 0 : index
    %9 = vector.load %arg4[%c0_6, %c0_7] : memref<2x1xf32, #tpu.memory_space<vmem>>, vector<2x1xf32>
    %cst_8 = arith.constant dense<0xFF800000> : vector<2xf32>
    %10 = vector.multi_reduction <maximumf>, %3, %cst_8 [1] : vector<2x1024xf32> to vector<2xf32>
    %11 = vector.shape_cast %10 : vector<2xf32> to vector<2x1xf32>
    %12 = arith.maximumf %9, %11 : vector<2x1xf32>
    %c0_9 = arith.constant 0 : index
    %c0_10 = arith.constant 0 : index
    %13 = vector.load %arg4[%c0_9, %c0_10] : memref<2x1xf32, #tpu.memory_space<vmem>>, vector<2x1xf32>
    tpu.vector_store %arg4[%c0_9, %c0_10], %12 {strides = array<i32>} : memref<2x1xf32, #tpu.memory_space<vmem>>, vector<2x1xf32>,
    return
  }
  func.func @transform_0(%arg0: i32, %arg1: i32) -> (i32, i32) {
    %c0_i32 = arith.constant 0 : i32
    return %arg0, %arg1 : i32, i32
  }
  func.func @transform_1(%arg0: i32, %arg1: i32) -> (i32, i32) {
    %c0_i32 = arith.constant 0 : i32
    %c0_i32_0 = arith.constant 0 : i32
    return %arg0, %c0_i32 : i32, i32
  }
  func.func @transform_2(%arg0: i32, %arg1: i32) -> (i32, i32) {
    %c0_i32 = arith.constant 0 : i32
    %c0_i32_0 = arith.constant 0 : i32
    return %arg0, %c0_i32 : i32, i32
  }
}

module attributes {stable_mosaic.version = 11 : i64} {
  func.func @_apply_kernel(%arg0: i32, %arg1: i32, %arg2: memref<3xf32, #tpu.memory_space<smem>>, %arg3: memref<2x1024xf32, #tpu.memory_space<vmem>>, %arg4: memref<2x1024xf32, #tpu.memory_space<vmem>>) attributes {dimension_semantics = [#tpu.dimension_semantics<parallel>, #tpu.dimension_semantics<parallel>], iteration_bounds = array<i64: 1, 1>, scalar_prefetch = 0 : i64, scratch_operands = 0 : i64, tpu.core_type = #tpu.core_type<tc>, window_params = [{transform_indices = @transform_0, window_bounds = array<i64: 3>}, {transform_indices = @transform_1, window_bounds = array<i64: 2, 1024>}, {transform_indices = @transform_2, window_bounds = array<i64: 2, 1024>}]} {
    %c0 = arith.constant 0 : index
    %0 = memref.load %arg2[%c0] : memref<3xf32, #tpu.memory_space<smem>>
    %c1 = arith.constant 1 : index
    %1 = memref.load %arg2[%c1] : memref<3xf32, #tpu.memory_space<smem>>
    %c2 = arith.constant 2 : index
    %2 = memref.load %arg2[%c2] : memref<3xf32, #tpu.memory_space<smem>>
    %c0_0 = arith.constant 0 : index
    %c0_1 = arith.constant 0 : index
    %3 = vector.load %arg3[%c0_0, %c0_1] : memref<2x1024xf32, #tpu.memory_space<vmem>>, vector<2x1024xf32>
    %4 = vector.broadcast %0 : f32 to vector<2x1024xf32>
    %5 = arith.subf %3, %4 : vector<2x1024xf32>
    %6 = vector.broadcast %2 : f32 to vector<2x1024xf32>
    %7 = arith.mulf %5, %6 : vector<2x1024xf32>
    %cst = arith.constant 0.000000e+00 : f32
    %cst_2 = arith.constant 2.550000e+02 : f32
    %8 = vector.broadcast %cst : f32 to vector<2x1024xf32>
    %9 = arith.maximumf %8, %7 : vector<2x1024xf32>
    %10 = vector.broadcast %cst_2 : f32 to vector<2x1024xf32>
    %11 = arith.minimumf %10, %9 : vector<2x1024xf32>
    %12 = math.roundeven %11 : vector<2x1024xf32>
    %13 = vector.broadcast %1 : f32 to vector<2x1024xf32>
    %14 = arith.mulf %12, %13 : vector<2x1024xf32>
    %15 = vector.broadcast %0 : f32 to vector<2x1024xf32>
    %16 = arith.addf %14, %15 : vector<2x1024xf32>
    %c0_3 = arith.constant 0 : index
    %c0_4 = arith.constant 0 : index
    %17 = vector.load %arg4[%c0_3, %c0_4] : memref<2x1024xf32, #tpu.memory_space<vmem>>, vector<2x1024xf32>
    tpu.vector_store %arg4[%c0_3, %c0_4], %16 {strides = array<i32>} : memref<2x1024xf32, #tpu.memory_space<vmem>>, vector<2x1024xf32>,
    return
  }
  func.func @transform_0(%arg0: i32, %arg1: i32) -> i32 {
    %c0_i32 = arith.constant 0 : i32
    %c0_i32_0 = arith.constant 0 : i32
    return %c0_i32 : i32
  }
  func.func @transform_1(%arg0: i32, %arg1: i32) -> (i32, i32) {
    %c0_i32 = arith.constant 0 : i32
    return %arg0, %arg1 : i32, i32
  }
  func.func @transform_2(%arg0: i32, %arg1: i32) -> (i32, i32) {
    %c0_i32 = arith.constant 0 : i32
    return %arg0, %arg1 : i32, i32
  }
}

</mosaic_0001>

<llo_original>
// kernel: quant_measure_forward.2
$region0: #{quant_measure_forward.2}
  #allocation0 [shape = 'u32[]', space=smem, size = 0x4, offset = 0x4, fixed_abs, tag = 'smem constant byte address 0x4 - core index']
  #allocation1 [shape = 'u32[144,128]{1,0:T(1,128)}', space=vmem, size = 0x12000, scoped, tag = 'internal scratch']
  %s0 = inlined_call_operand.vmem [shape: f32[2,1024], index: 0, kind: input, shape index: {}]
  %s1 = inlined_call_operand.vmem [shape: f32[2,1], index: 1, kind: output, shape index: {0}]
  %s2 = inlined_call_operand.vmem [shape: f32[2,1], index: 2, kind: output, shape index: {1}]
  %3 = xla_tuple %s1, %s2
  %s4 = sld [smem:[#allocation0]]
  $region26: #{quant_measure_forward.2} parent=0
    _
  %s6 = ssub.s32 1, %s4
  %s7 = scalar_select 0, %s6, %s4
  // Predicated region
  $region2: #{quant_measure_forward.2} parent=0 // pred_check
    _
  $region3: #{quant_measure_forward.2} parent=0 // pred_check_branch
    %9 = sbr.rel (0) target = $region5
  $region4: #{quant_measure_forward.2} parent=0 // pred_region
    _
  $region5: #{quant_measure_forward.2} parent=0 // pred_fallthru
    _
  %p10 = scmp.eq.s32.totalorder 0, 0
  // Predicated region
  $region6: #{quant_measure_forward.2} parent=0 // pred_check
    %p11 = pneg %p10
  $region7: #{quant_measure_forward.2} parent=0 // pred_check_branch
    %13 = sbr.rel (%p11) target = $region9
  $region8: #{quant_measure_forward.2} parent=0 // pred_region
    %vm14 = vcmask 1024
    %15 = vst.msk [vmem:[%s1] sm:$0x3] %vm14, inf
    %16 = vst.msk [vmem:[%s2] sm:$0x3] %vm14, -inf
  $region9: #{quant_measure_forward.2} parent=0 // pred_fallthru
    _
  %v17 = vld [vmem:[%s0] sm:$0xff]
  %v18 = vld [vmem:[%s0 + $0x8] sm:$0xff]
  %v19 = vld [vmem:[%s1] sm:$0x3]
  %v22 = vcombine.high %v17, %v17
  %v24 = vunpack.c.l.s4 1983009808
  %v25 = vunpack.c.0.s8 %v24
  %v26 = vlaneseq
  %v27 = vshrl.u32 %v26, 7
  %v28 = vsub.s32 %v25, %v27
  %v29 = vrot.slane %v17, %v28
  %v31 = vunpack.c.l.s4 1983009808
  %v32 = vunpack.c.0.s8 %v31
  %v33 = vlaneseq
  %v34 = vshrl.u32 %v33, 7
  %v35 = vsub.s32 %v32, %v34
  %v36 = vrot.slane %v22, %v35
  %v37 = vcombine.high %v29, %v29
  %v38 = vcombine.high %v36, %v36
  %v39 = vcombine.high %v18, %v18
  %v41 = vunpack.c.l.s4 1983009808
  %v42 = vunpack.c.0.s8 %v41
  %v43 = vlaneseq
  %v44 = vshrl.u32 %v43, 7
  %v45 = vsub.s32 %v42, %v44
  %v46 = vrot.slane %v18, %v45
  %v48 = vunpack.c.l.s4 1983009808
  %v49 = vunpack.c.0.s8 %v48
  %v50 = vlaneseq
  %v51 = vshrl.u32 %v50, 7
  %v52 = vsub.s32 %v49, %v51
  %v53 = vrot.slane %v39, %v52
  %v54 = vcombine.high %v46, %v46
  %v55 = vcombine.high %v53, %v53
  %vm64 = vcmask 1041408
  %v65 = vsel %vm64, %v29, inf
  %v66 = vsel %vm64, %v37, inf
  %v67 = vsel %vm64, %v36, inf
  %v68 = vsel %vm64, %v38, inf
  %v69 = vsel %vm64, %v46, inf
  %v70 = vmin.f32 %v65, %v69
  %v71 = vsel %vm64, %v54, inf
  %v72 = vmin.f32 %v66, %v71
  %v73 = vsel %vm64, %v53, inf
  %v74 = vmin.f32 %v67, %v73
  %v75 = vsel %vm64, %v55, inf
  %v76 = vmin.f32 %v68, %v75
  %v77 = vmin.f32 %v70, %v72
  %v78 = vmin.f32 %v74, %v76
  %v79 = vmin.f32 %v77, %v78
  %80 = vmin.xlane.f32.xlu0 %v79
  %v81 = vpop.xlane.xlu0 %80
  %v82 = vmin.f32 %v19, %v81
  %vm83 = vcmask 1024
  %84 = vst.msk [vmem:[%s1] sm:$0x3] %vm83, %v82
  %v85 = vld [vmem:[%s2] sm:$0x3]
  %v86 = vsel %vm64, %v29, -inf
  %v87 = vsel %vm64, %v37, -inf
  %v88 = vsel %vm64, %v36, -inf
  %v89 = vsel %vm64, %v38, -inf
  %v90 = vsel %vm64, %v46, -inf
  %v91 = vmax.f32 %v86, %v90
  %v92 = vsel %vm64, %v54, -inf
  %v93 = vmax.f32 %v87, %v92
  %v94 = vsel %vm64, %v53, -inf
  %v95 = vmax.f32 %v88, %v94
  %v96 = vsel %vm64, %v55, -inf
  %v97 = vmax.f32 %v89, %v96
  %v98 = vmax.f32 %v91, %v93
  %v99 = vmax.f32 %v95, %v97
  %v100 = vmax.f32 %v98, %v99
  %101 = vmax.xlane.f32.xlu0 %v100
  %v102 = vpop.xlane.xlu0 %101
  %v103 = vmax.f32 %v85, %v102
  %104 = vst.msk [vmem:[%s2] sm:$0x3] %vm83, %v103
  // Predicated region
  $region10: #{quant_measure_forward.2} parent=0 // pred_check
    _
  $region11: #{quant_measure_forward.2} parent=0 // pred_check_branch
    %106 = sbr.rel (0) target = $region13
  $region12: #{quant_measure_forward.2} parent=0 // pred_region
    _
  $region13: #{quant_measure_forward.2} parent=0 // pred_fallthru
    _
  // Predicated region
  $region14: #{quant_measure_forward.2} parent=0 // pred_check
    _
  $region15: #{quant_measure_forward.2} parent=0 // pred_check_branch
    %108 = sbr.rel (0) target = $region17
  $region16: #{quant_measure_forward.2} parent=0 // pred_region
    _
  $region17: #{quant_measure_forward.2} parent=0 // pred_fallthru
    _
  // Predicated region
  $region18: #{quant_measure_forward.2} parent=0 // pred_check
    _
  $region19: #{quant_measure_forward.2} parent=0 // pred_check_branch
    %110 = sbr.rel (0) target = $region21
  $region20: #{quant_measure_forward.2} parent=0 // pred_region
    _
  $region21: #{quant_measure_forward.2} parent=0 // pred_fallthru
    _
  // Predicated region
  $region22: #{quant_measure_forward.2} parent=0 // pred_check
    _
  $region23: #{quant_measure_forward.2} parent=0 // pred_check_branch
    %112 = sbr.rel (0) target = $region25
  $region24: #{quant_measure_forward.2} parent=0 // pred_region
    _
  $region25: #{quant_measure_forward.2} parent=0 // pred_fallthru
    _

// kernel: quant_measure_forward.3
$region0: #{quant_measure_forward.3}
  #allocation0 [shape = 'u32[]', space=smem, size = 0x4, offset = 0x4, fixed_abs, tag = 'smem constant byte address 0x4 - core index']
  #allocation1 [shape = 'u32[144,128]{1,0:T(1,128)}', space=vmem, size = 0x12000, scoped, tag = 'internal scratch']
  %s0 = inlined_call_operand.vmem [shape: f32[3], index: 0, kind: input, shape index: {}]
  %s1 = inlined_call_operand.vmem [shape: f32[2,1024], index: 1, kind: input, shape index: {}]
  %s2 = inlined_call_operand.vmem [shape: f32[2,1024], index: 2, kind: output, shape index: {}]
  %s3 = sld [smem:[#allocation0]]
  $region22: #{quant_measure_forward.3} parent=0
    _
  %s5 = ssub.s32 1, %s3
  %s6 = scalar_select 0, %s5, %s3
  $region1: #{quant_measure_forward.3} parent=0
    #allocation2 [shape = 'u8[512]{0}', space=smem, size = 0x200, scoped, tag = 'input window, operand 0, single buffered']
    #allocation3 [shape = 's32[1]{0}', space=sflag, size = 0x4, scoped, tag = 'scoped memory for quant_measure_forward.3']
    %7 = vsyncpa [#allocation3], 0
    // Predicated region
    $region2: #{quant_measure_forward.3} parent=1 // pred_check
      _
    $region3: #{quant_measure_forward.3} parent=1 // pred_check_branch
      %9 = sbr.rel (0) target = $region5
    $region4: #{quant_measure_forward.3} parent=1 // pred_region
      %s11 = ssub.s32 16, 16
      %12 = vsyncadd [#allocation3], %s11
      %s14 = sshll.u32 %s0, 4
      %s15 = int_to_ptr.vmem [resolvable:$true] %s14
      %17 = dma.vmem_to_smem %s15, 16, [#allocation2], [#allocation3]
    $region5: #{quant_measure_forward.3} parent=1 // pred_fallthru
      _
    // Predicated region
    $region6: #{quant_measure_forward.3} parent=1 // pred_check
      _
    $region7: #{quant_measure_forward.3} parent=1 // pred_check_branch
      %19 = sbr.rel (0) target = $region9
    $region8: #{quant_measure_forward.3} parent=1 // pred_region
      _
    $region9: #{quant_measure_forward.3} parent=1 // pred_fallthru
      _
    // Predicated region
    $region10: #{quant_measure_forward.3} parent=1 // pred_check
      _
    $region11: #{quant_measure_forward.3} parent=1 // pred_check_branch
      %21 = sbr.rel (0) target = $region13
    $region12: #{quant_measure_forward.3} parent=1 // pred_region
      %22 = dma.done [#allocation3], 16
    $region13: #{quant_measure_forward.3} parent=1 // pred_fallthru
      _
    %23 = sfence
    %s24 = sld [smem:[#allocation2]]
    %s25 = sld [smem:[#allocation2 + $0x1]]
    %s26 = sld [smem:[#allocation2 + $0x2]]
    %v27 = vld [vmem:[%s1] sm:$0xff]
    %v28 = vld [vmem:[%s1 + $0x8] sm:$0xff]
    %v29 = vstv %s24
    %v30 = vsub.f32 %v27, %v29
    %v31 = vsub.f32 %v28, %v29
    %v32 = vstv %s26
    %v33 = vmul.f32 %v30, %v32
    %v34 = vmul.f32 %v31, %v32
    %v35 = vmax.f32 %v33, 0.0
    %v36 = vmax.f32 %v34, 0.0
    %v37 = vmin.f32 %v35, 255.0
    %v38 = vmin.f32 %v36, 255.0
    %v39 = vround.ne.pseudo %v37
    %v40 = vround.ne.pseudo %v38
    %v41 = vstv %s25
    %v42 = vmul.f32 %v39, %v41
    %v43 = vmul.f32 %v40, %v41
    %v44 = vadd.f32 %v42, %v29
    %v45 = vadd.f32 %v43, %v29
    %46 = vst [vmem:[%s2] sm:$0xff] %v44
    %47 = vst [vmem:[%s2 + $0x8] sm:$0xff] %v45
    // Predicated region
    $region14: #{quant_measure_forward.3} parent=1 // pred_check
      _
    $region15: #{quant_measure_forward.3} parent=1 // pred_check_branch
      %49 = sbr.rel (0) target = $region17
    $region16: #{quant_measure_forward.3} parent=1 // pred_region
      _
    $region17: #{quant_measure_forward.3} parent=1 // pred_fallthru
      _
    // Predicated region
    $region18: #{quant_measure_forward.3} parent=1 // pred_check
      _
    $region19: #{quant_measure_forward.3} parent=1 // pred_check_branch
      %51 = sbr.rel (0) target = $region21
    $region20: #{quant_measure_forward.3} parent=1 // pred_region
      _
    $region21: #{quant_measure_forward.3} parent=1 // pred_fallthru
      _
    %52 = vsyncpa [#allocation3], 1

</llo_original>
